<compile_context>
chip_gen: v5e
topology: v5e:2x2
jax: 0.10.0
libtpu: 0.0.40
codegen_flags: <defaults>
</compile_context>

<pallas_src>
import jax
import jax.numpy as jnp
from jax.experimental import pallas as pl
from jax.experimental.pallas import tpu as pltpu


def attn_classifier_kernel(x_ref, w1_ref, b1_ref, w2_ref, b2_ref,
                           exp_ref, wc_ref, bc_ref, logp_ref, attn_ref):
    # x_ref block: (TB, S*H), fully lane-dense (S*H is a multiple of 128 here).
    x = x_ref[...]

    # --- attention MLP layer 1: per-position Linear(H, 32) + ReLU as one
    #     lane-dense MXU matmul against the block-diagonal W1 ---
    h1 = jnp.dot(x, w1_ref[...], preferred_element_type=jnp.float32) + b1_ref[...]
    h1 = jnp.maximum(h1, 0.0)                          # (TB, S*M)

    # --- attention MLP layer 2: per-position Linear(32, 1) as a block-diagonal
    #     (TB, S*M) x (S*M, S) matmul; b2 is an SMEM scalar ---
    e = jnp.dot(h1, w2_ref[...], preferred_element_type=jnp.float32) + b2_ref[0, 0]

    # --- softmax over the sequence (lane) axis ---
    m = jnp.max(e, axis=-1, keepdims=True)
    p = jnp.exp(e - m)
    denom = jnp.sum(p, axis=-1, keepdims=True)
    inv = pl.reciprocal(denom, approx=True)            # EUP slot (otherwise idle)
    inv = inv * (2.0 - denom * inv)                    # one Newton step -> ~f32 accuracy
    a = p * inv                                        # (TB, S), lane-dense

    # --- attention pooling + classifier head, fused and lane-dense ---
    # a_rep[b, j*H + h] = a[b, j]   (tiny (TB,S)x(S,S*H) MXU matmul)
    a_rep = jnp.dot(a, exp_ref[...], preferred_element_type=jnp.float32)     # (TB, S*H)
    # logits[b, c] = sum_{j,h} x[b,j,h] * a[b,j] * wc[h,c]
    #   (wc_ref is wc tiled S times along its rows -> (S*H, C))
    logits = (jnp.dot(x * a_rep, wc_ref[...], preferred_element_type=jnp.float32)
              + bc_ref[...])                           # (TB, C)

    # --- log_softmax over classes (lane axis) ---
    lmax = jnp.max(logits, axis=-1, keepdims=True)
    shifted = logits - lmax
    lse = jnp.log(jnp.sum(jnp.exp(shifted), axis=-1, keepdims=True))

    logp_ref[...] = shifted - lse                      # (TB, C)
    attn_ref[...] = a                                  # (TB, S)


def attn_classifier(x, w1, b1, w2, b2, wc, bc, *, tb=None):
    """x: (B, S, H) f32, w1: (H, M), b1: (1, M), w2: (M, 1), b2: (1, 1),
    wc: (H, C), bc: (1, C). Returns (log_probs (B, C), attns (B, S, 1))."""
    B, S, H = x.shape
    M = w1.shape[1]
    C = wc.shape[1]
    f32 = jnp.float32

    # ---- lane-dense layouts built once in the wrapper (cheap, weight-sized) ----
    x_dense = x.reshape(B, S * H)                              # free, contiguous reshape
    eye_s = jnp.eye(S, dtype=f32)
    w1_blk = jnp.kron(eye_s, w1.astype(f32))                   # (S*H, S*M) block-diag
    b1_blk = jnp.tile(b1.reshape(1, M).astype(f32), (1, S))    # (1, S*M)
    w2_blk = jnp.kron(eye_s, w2.reshape(M, 1).astype(f32))     # (S*M, S) block-diag
    expand = jnp.kron(eye_s, jnp.ones((1, H), f32))            # (S, S*H): a -> a repeated per lane-group
    wc_blk = jnp.tile(wc.astype(f32), (S, 1))                  # (S*H, C): pooling + head fused
    bc_row = bc.reshape(1, C).astype(f32)
    b2_s = b2.reshape(1, 1).astype(f32)                        # SMEM scalar

    # ---- batch tile: big tiles to amortize the ~0.35us/step grid overhead,
    #      >=2 grid steps when possible (keeps both v7x TensorCores busy) ----
    def _round_up(v, m):
        return ((v + m - 1) // m) * m

    if tb is None:
        tb = B if B <= 8 else min(1024, max(8, _round_up(pl.cdiv(B, 2), 8)))
    else:
        tb = min(tb, B)
        if tb != B and tb % 8 != 0:
            tb = max(8, (tb // 8) * 8)
    grid = (pl.cdiv(B, tb),)
    # Note: when B % tb != 0 the padded tail rows of the last block compute on
    # uninitialized VMEM (possible inf/NaN), but every op is row-independent and
    # the writeback is masked, so returned outputs are unaffected.

    grid_spec = pl.GridSpec(
        grid=grid,
        in_specs=[
            pl.BlockSpec((tb, S * H), lambda i: (i, 0)),           # x (lane-dense)
            pl.BlockSpec((S * H, S * M), lambda i: (0, 0)),        # W1 block-diag (VMEM-resident)
            pl.BlockSpec((1, S * M), lambda i: (0, 0)),            # b1 tiled
            pl.BlockSpec((S * M, S), lambda i: (0, 0)),            # W2 block-diag
            pl.BlockSpec(memory_space=pltpu.MemorySpace.SMEM),     # b2 scalar
            pl.BlockSpec((S, S * H), lambda i: (0, 0)),            # attention expansion matrix
            pl.BlockSpec((S * H, C), lambda i: (0, 0)),            # wc tiled (pool+head fused)
            pl.BlockSpec((1, C), lambda i: (0, 0)),                # bc
        ],
        out_specs=[
            pl.BlockSpec((tb, C), lambda i: (i, 0)),               # log-probs
            pl.BlockSpec((tb, S), lambda i: (i, 0)),               # attn weights
        ],
    )

    logp, attn = pl.pallas_call(
        attn_classifier_kernel,
        out_shape=(
            jax.ShapeDtypeStruct((B, C), f32),
            jax.ShapeDtypeStruct((B, S), f32),
        ),
        grid_spec=grid_spec,
        compiler_params=pltpu.CompilerParams(
            dimension_semantics=("parallel",),
            vmem_limit_bytes=32 * 1024 * 1024,   # explicit budget; safe on v5e/v6e/v7x
        ),
    )(x_dense, w1_blk, b1_blk, w2_blk, b2_s, expand, wc_blk, bc_row)

    # Restore the (B, S, 1) attention shape of the PyTorch module (free reshape).
    return logp, attn.reshape(B, S, 1)


def reference(x, w1, b1, w2, b2, wc, bc):
    """Pure-JAX reference matching the PyTorch forward."""
    B, S, H = x.shape
    h1 = jax.nn.relu(x.reshape(-1, H) @ w1 + b1[0])
    e = (h1 @ w2 + b2[0]).reshape(B, S)
    a = jax.nn.softmax(e, axis=1)[..., None]                  # (B, S, 1)
    feats = (x * a).sum(axis=1)                               # (B, H)
    logits = feats @ wc + bc[0]
    return jax.nn.log_softmax(logits, axis=1), a


if __name__ == "__main__":
    h_dim = 32
    c_num = 4
    B, S = 16, 8          # small demo; auto tile -> tb=8, 2-step parallel grid

    key = jax.random.PRNGKey(0)
    kx, k1, k2, k3, k4, k5, k6 = jax.random.split(key, 7)

    x = jax.random.normal(kx, (B, S, h_dim), dtype=jnp.float32)

    # Deterministic parameter init (uniform, PyTorch-Linear-like scaling).
    def init_lin(kw, kb, fan_in, fan_out):
        bound = 1.0 / (fan_in ** 0.5)
        w = jax.random.uniform(kw, (fan_in, fan_out), jnp.float32, -bound, bound)
        b = jax.random.uniform(kb, (1, fan_out), jnp.float32, -bound, bound)
        return w, b

    w1, b1 = init_lin(k1, k2, h_dim, 32)      # attn.main[0]
    w2, b2 = init_lin(k3, k4, 32, 1)          # attn.main[2]
    wc, bc = init_lin(k5, k6, h_dim, c_num)   # classifier head

    logp, attns = attn_classifier(x, w1, b1, w2, b2, wc, bc)
    jax.block_until_ready((logp, attns))

    logp_ref, attns_ref = reference(x, w1, b1, w2, b2, wc, bc)
    assert logp.shape == (B, c_num) and attns.shape == (B, S, 1)
    assert jnp.allclose(logp, logp_ref, atol=1e-4, rtol=1e-4)
    assert jnp.allclose(attns, attns_ref, atol=1e-4, rtol=1e-4)

    print("KERNEL_OK")
</pallas_src>

<mosaic_0001>
module attributes {stable_mosaic.version = 11 : i64} {
  func.func @attn_classifier_kernel(%arg0: i32, %arg1: memref<8x256xf32, #tpu.memory_space<vmem>>, %arg2: memref<256x256xf32, #tpu.memory_space<vmem>>, %arg3: memref<1x256xf32, #tpu.memory_space<vmem>>, %arg4: memref<256x8xf32, #tpu.memory_space<vmem>>, %arg5: memref<1x1xf32, #tpu.memory_space<smem>>, %arg6: memref<8x256xf32, #tpu.memory_space<vmem>>, %arg7: memref<256x4xf32, #tpu.memory_space<vmem>>, %arg8: memref<1x4xf32, #tpu.memory_space<vmem>>, %arg9: memref<8x4xf32, #tpu.memory_space<vmem>>, %arg10: memref<8x8xf32, #tpu.memory_space<vmem>>) attributes {dimension_semantics = [#tpu.dimension_semantics<parallel>], iteration_bounds = array<i64: 2>, scalar_prefetch = 0 : i64, scratch_operands = 0 : i64, tpu.core_type = #tpu.core_type<tc>, window_params = [{transform_indices = @transform_0, window_bounds = array<i64: 8, 256>}, {pipeline_mode = #tpu.pipeline_mode<synchronous>, transform_indices = @transform_1, window_bounds = array<i64: 256, 256>}, {pipeline_mode = #tpu.pipeline_mode<synchronous>, transform_indices = @transform_2, window_bounds = array<i64: 1, 256>}, {pipeline_mode = #tpu.pipeline_mode<synchronous>, transform_indices = @transform_3, window_bounds = array<i64: 256, 8>}, {transform_indices = @transform_4, window_bounds = array<i64: 1, 1>}, {pipeline_mode = #tpu.pipeline_mode<synchronous>, transform_indices = @transform_5, window_bounds = array<i64: 8, 256>}, {pipeline_mode = #tpu.pipeline_mode<synchronous>, transform_indices = @transform_6, window_bounds = array<i64: 256, 4>}, {pipeline_mode = #tpu.pipeline_mode<synchronous>, transform_indices = @transform_7, window_bounds = array<i64: 1, 4>}, {transform_indices = @transform_8, window_bounds = array<i64: 8, 4>}, {transform_indices = @transform_9, window_bounds = array<i64: 8, 8>}]} {
    %c0 = arith.constant 0 : index
    %c0_0 = arith.constant 0 : index
    %0 = vector.load %arg1[%c0, %c0_0] : memref<8x256xf32, #tpu.memory_space<vmem>>, vector<8x256xf32>
    %c0_1 = arith.constant 0 : index
    %c0_2 = arith.constant 0 : index
    %1 = vector.load %arg2[%c0_1, %c0_2] : memref<256x256xf32, #tpu.memory_space<vmem>>, vector<256x256xf32>
    %cst = arith.constant dense<0.000000e+00> : vector<8x256xf32>
    %2 = tpu.matmul %0, %1, %cst {dimension_numbers = #tpu.dot_dimension_numbers<[1], [0], [0], [1], [0, 0, 1, 1], [], []>} : vector<8x256xf32>, vector<256x256xf32>, vector<8x256xf32> -> vector<8x256xf32>
    %c0_3 = arith.constant 0 : index
    %c0_4 = arith.constant 0 : index
    %3 = vector.load %arg3[%c0_3, %c0_4] : memref<1x256xf32, #tpu.memory_space<vmem>>, vector<1x256xf32>
    %4 = vector.broadcast %3 : vector<1x256xf32> to vector<8x256xf32>
    %5 = arith.addf %2, %4 : vector<8x256xf32>
    %cst_5 = arith.constant 0.000000e+00 : f32
    %6 = vector.broadcast %cst_5 : f32 to vector<8x256xf32>
    %7 = arith.maximumf %5, %6 : vector<8x256xf32>
    %c0_6 = arith.constant 0 : index
    %c0_7 = arith.constant 0 : index
    %8 = vector.load %arg4[%c0_6, %c0_7] : memref<256x8xf32, #tpu.memory_space<vmem>>, vector<256x8xf32>
    %cst_8 = arith.constant dense<0.000000e+00> : vector<8x8xf32>
    %9 = tpu.matmul %7, %8, %cst_8 {dimension_numbers = #tpu.dot_dimension_numbers<[1], [0], [0], [1], [0, 0, 1, 1], [], []>} : vector<8x256xf32>, vector<256x8xf32>, vector<8x8xf32> -> vector<8x8xf32>
    %c0_9 = arith.constant 0 : index
    %c0_10 = arith.constant 0 : index
    %10 = memref.load %arg5[%c0_9, %c0_10] : memref<1x1xf32, #tpu.memory_space<smem>>
    %11 = vector.broadcast %10 : f32 to vector<8x8xf32>
    %12 = arith.addf %9, %11 : vector<8x8xf32>
    %cst_11 = arith.constant dense<0xFF800000> : vector<8xf32>
    %13 = vector.multi_reduction <maximumf>, %12, %cst_11 [1] : vector<8x8xf32> to vector<8xf32>
    %14 = vector.shape_cast %13 : vector<8xf32> to vector<8x1xf32>
    %15 = vector.broadcast %14 : vector<8x1xf32> to vector<8x8xf32>
    %16 = arith.subf %12, %15 : vector<8x8xf32>
    %17 = math.exp %16 : vector<8x8xf32>
    %cst_12 = arith.constant dense<0.000000e+00> : vector<8xf32>
    %18 = vector.multi_reduction <add>, %17, %cst_12 [1] : vector<8x8xf32> to vector<8xf32>
    %19 = vector.shape_cast %18 : vector<8xf32> to vector<8x1xf32>
    %20 = tpu.reciprocal %19 {approx = true} : vector<8x1xf32> -> vector<8x1xf32>
    %21 = arith.mulf %19, %20 : vector<8x1xf32>
    %cst_13 = arith.constant 2.000000e+00 : f32
    %22 = vector.broadcast %cst_13 : f32 to vector<8x1xf32>
    %23 = arith.subf %22, %21 : vector<8x1xf32>
    %24 = arith.mulf %20, %23 : vector<8x1xf32>
    %25 = vector.broadcast %24 : vector<8x1xf32> to vector<8x8xf32>
    %26 = arith.mulf %17, %25 : vector<8x8xf32>
    %c0_14 = arith.constant 0 : index
    %c0_15 = arith.constant 0 : index
    %27 = vector.load %arg6[%c0_14, %c0_15] : memref<8x256xf32, #tpu.memory_space<vmem>>, vector<8x256xf32>
    %cst_16 = arith.constant dense<0.000000e+00> : vector<8x256xf32>
    %28 = tpu.matmul %26, %27, %cst_16 {dimension_numbers = #tpu.dot_dimension_numbers<[1], [0], [0], [1], [0, 0, 1, 1], [], []>} : vector<8x8xf32>, vector<8x256xf32>, vector<8x256xf32> -> vector<8x256xf32>
    %29 = arith.mulf %0, %28 : vector<8x256xf32>
    %c0_17 = arith.constant 0 : index
    %c0_18 = arith.constant 0 : index
    %30 = vector.load %arg7[%c0_17, %c0_18] : memref<256x4xf32, #tpu.memory_space<vmem>>, vector<256x4xf32>
    %cst_19 = arith.constant dense<0.000000e+00> : vector<8x4xf32>
    %31 = tpu.matmul %29, %30, %cst_19 {dimension_numbers = #tpu.dot_dimension_numbers<[1], [0], [0], [1], [0, 0, 1, 1], [], []>} : vector<8x256xf32>, vector<256x4xf32>, vector<8x4xf32> -> vector<8x4xf32>
    %c0_20 = arith.constant 0 : index
    %c0_21 = arith.constant 0 : index
    %32 = vector.load %arg8[%c0_20, %c0_21] : memref<1x4xf32, #tpu.memory_space<vmem>>, vector<1x4xf32>
    %33 = vector.broadcast %32 : vector<1x4xf32> to vector<8x4xf32>
    %34 = arith.addf %31, %33 : vector<8x4xf32>
    %cst_22 = arith.constant dense<0xFF800000> : vector<8xf32>
    %35 = vector.multi_reduction <maximumf>, %34, %cst_22 [1] : vector<8x4xf32> to vector<8xf32>
    %36 = vector.shape_cast %35 : vector<8xf32> to vector<8x1xf32>
    %37 = vector.broadcast %36 : vector<8x1xf32> to vector<8x4xf32>
    %38 = arith.subf %34, %37 : vector<8x4xf32>
    %39 = math.exp %38 : vector<8x4xf32>
    %cst_23 = arith.constant dense<0.000000e+00> : vector<8xf32>
    %40 = vector.multi_reduction <add>, %39, %cst_23 [1] : vector<8x4xf32> to vector<8xf32>
    %41 = vector.shape_cast %40 : vector<8xf32> to vector<8x1xf32>
    %42 = math.log %41 : vector<8x1xf32>
    %43 = vector.broadcast %42 : vector<8x1xf32> to vector<8x4xf32>
    %44 = arith.subf %38, %43 : vector<8x4xf32>
    %c0_24 = arith.constant 0 : index
    %c0_25 = arith.constant 0 : index
    %45 = vector.load %arg9[%c0_24, %c0_25] : memref<8x4xf32, #tpu.memory_space<vmem>>, vector<8x4xf32>
    tpu.vector_store %arg9[%c0_24, %c0_25], %44 {strides = array<i32>} : memref<8x4xf32, #tpu.memory_space<vmem>>, vector<8x4xf32>,
    %c0_26 = arith.constant 0 : index
    %c0_27 = arith.constant 0 : index
    %46 = vector.load %arg10[%c0_26, %c0_27] : memref<8x8xf32, #tpu.memory_space<vmem>>, vector<8x8xf32>
    tpu.vector_store %arg10[%c0_26, %c0_27], %26 {strides = array<i32>} : memref<8x8xf32, #tpu.memory_space<vmem>>, vector<8x8xf32>,
    return
  }
  func.func @transform_0(%arg0: i32) -> (i32, i32) {
    %c0_i32 = arith.constant 0 : i32
    %c0_i32_0 = arith.constant 0 : i32
    return %arg0, %c0_i32 : i32, i32
  }
  func.func @transform_1(%arg0: i32) -> (i32, i32) {
    %c0_i32 = arith.constant 0 : i32
    %c0_i32_0 = arith.constant 0 : i32
    %c0_i32_1 = arith.constant 0 : i32
    return %c0_i32, %c0_i32_0 : i32, i32
  }
  func.func @transform_2(%arg0: i32) -> (i32, i32) {
    %c0_i32 = arith.constant 0 : i32
    %c0_i32_0 = arith.constant 0 : i32
    %c0_i32_1 = arith.constant 0 : i32
    return %c0_i32, %c0_i32_0 : i32, i32
  }
  func.func @transform_3(%arg0: i32) -> (i32, i32) {
    %c0_i32 = arith.constant 0 : i32
    %c0_i32_0 = arith.constant 0 : i32
    %c0_i32_1 = arith.constant 0 : i32
    return %c0_i32, %c0_i32_0 : i32, i32
  }
  func.func @transform_4(%arg0: i32) -> (i32, i32) {
    %c0_i32 = arith.constant 0 : i32
    %c0_i32_0 = arith.constant 0 : i32
    %c0_i32_1 = arith.constant 0 : i32
    return %c0_i32, %c0_i32_0 : i32, i32
  }
  func.func @transform_5(%arg0: i32) -> (i32, i32) {
    %c0_i32 = arith.constant 0 : i32
    %c0_i32_0 = arith.constant 0 : i32
    %c0_i32_1 = arith.constant 0 : i32
    return %c0_i32, %c0_i32_0 : i32, i32
  }
  func.func @transform_6(%arg0: i32) -> (i32, i32) {
    %c0_i32 = arith.constant 0 : i32
    %c0_i32_0 = arith.constant 0 : i32
    %c0_i32_1 = arith.constant 0 : i32
    return %c0_i32, %c0_i32_0 : i32, i32
  }
  func.func @transform_7(%arg0: i32) -> (i32, i32) {
    %c0_i32 = arith.constant 0 : i32
    %c0_i32_0 = arith.constant 0 : i32
    %c0_i32_1 = arith.constant 0 : i32
    return %c0_i32, %c0_i32_0 : i32, i32
  }
  func.func @transform_8(%arg0: i32) -> (i32, i32) {
    %c0_i32 = arith.constant 0 : i32
    %c0_i32_0 = arith.constant 0 : i32
    return %arg0, %c0_i32 : i32, i32
  }
  func.func @transform_9(%arg0: i32) -> (i32, i32) {
    %c0_i32 = arith.constant 0 : i32
    %c0_i32_0 = arith.constant 0 : i32
    return %arg0, %c0_i32 : i32, i32
  }
}

</mosaic_0001>

<llo_original>
// kernel: tpu_custom_call.1
$region0: #{tpu_custom_call.1}
  #allocation0 [shape = 'u32[]', space=smem, size = 0x4, offset = 0x4, fixed_abs, tag = 'smem constant byte address 0x4 - core index']
  #allocation1 [shape = 'u32[72,128]{1,0:T(1,128)}', space=vmem, size = 0x9000, scoped, tag = 'internal scratch']
  #allocation2 [shape = 'f32[1,1]{1,0:T(1,128)S(6)}', space=smem, size = 0x200, scoped, tag = 'scoped memory for tpu_custom_call.1']
  %s0 = inlined_call_operand.hbm [shape: f32[16,256], index: 0, kind: input, shape index: {}]
  %s1 = inlined_call_operand.vmem [shape: f32[256,256], index: 1, kind: input, shape index: {}]
  %s2 = inlined_call_operand.hbm [shape: f32[1,256], index: 2, kind: input, shape index: {}]
  %s3 = inlined_call_operand.vmem [shape: f32[256,8], index: 3, kind: input, shape index: {}]
  %s4 = inlined_call_operand.<no memory space> [shape: f32[1,1], index: 4, kind: input, shape index: {}]
  %s5 = inlined_call_operand.vmem [shape: f32[8,256], index: 5, kind: input, shape index: {}]
  %s6 = inlined_call_operand.vmem [shape: f32[256,4], index: 6, kind: input, shape index: {}]
  %s7 = inlined_call_operand.vmem [shape: f32[1,4], index: 7, kind: input, shape index: {}]
  %s8 = inlined_call_operand.vmem [shape: f32[16,4], index: 8, kind: output, shape index: {0}]
  %s9 = inlined_call_operand.vmem [shape: f32[16,8], index: 9, kind: output, shape index: {1}]
  %10 = xla_tuple %s8, %s9
  %s11 = sld [smem:[#allocation0]]
  $region81: #{tpu_custom_call.1} parent=0
    _
  %s13 = ssub.s32 1, %s11
  %s14 = scalar_select 0, %s13, %s11
  %15 = sst [smem:[#allocation2]] %s4
  $region1: #{tpu_custom_call.1} parent=0
    #allocation3 [shape = 'u8[16384]{0}', space=vmem, size = 0x4000, scoped, tag = 'input window, operand 0']
    #allocation4 [shape = 's32[2]{0}', space=sflag, size = 0x8, scoped, tag = 'scoped memory for tpu_custom_call.1']
    #allocation5 [shape = 'u8[1024]{0}', space=vmem, size = 0x400, scoped, tag = 'input window, operand 2, single buffered']
    #allocation6 [shape = 's32[1]{0}', space=sflag, size = 0x4, scoped, tag = 'scoped memory for tpu_custom_call.1']
    %16 = vsyncpa [#allocation4], 0
    %s17 = scalar_lea.sflag [#allocation4], 1
    %18 = vsyncpa %s17, 0
    %19 = vsyncpa [#allocation6], 0
    loop: start=0, step=1, limit=4
    $region2: #{tpu_custom_call.1} parent=1 // loop_pre_header
      _
    $region3: #{tpu_custom_call.1} parent=1 // loop_header
      %s21 = sphi 0, %s25
      %p22 = scmp.ge.s32.totalorder %s21, 4
      %s31 = sphi 0, %s33
      %s34 = sphi 0, %s31
      %s35 = sphi 0, %s34
      %s51 = sphi 0, %s35
      %s55 = sphi 0, %s55
      %s57 = sphi 0, %s55
      %s58 = sphi 0, %s57
      %s72 = sphi 0, %s58
      %s76 = sphi 0, %s76
      %s78 = sphi 0, %s76
      %s79 = sphi 0, %s78
      %s93 = sphi 0, %s79
      %s97 = sphi 0, %s97
      %s99 = sphi 0, %s97
      %s100 = sphi 0, %s99
      %s114 = sphi 0, %s100
      %s118 = sphi 0, %s118
      %s120 = sphi 0, %s118
      %s121 = sphi 0, %s120
      %s135 = sphi 0, %s121
      %s139 = sphi 0, %s139
      %s141 = sphi 0, %s139
      %s142 = sphi 0, %s141
      %s156 = sphi 0, %s142
      %s160 = sphi 0, %s160
      %s162 = sphi 0, %s160
      %s163 = sphi 0, %s162
      %s177 = sphi 0, %s163
      %s181 = sphi 0, %s181
      %s183 = sphi 0, %s181
      %s184 = sphi 0, %s183
      %s198 = sphi 0, %s184
      %s204 = sphi 0, %s206
      %s207 = sphi 0, %s204
      %s208 = sphi 0, %s207
      %s224 = sphi 0, %s208
      %s230 = sphi 0, %s232
      %s233 = sphi 0, %s230
      %s234 = sphi 0, %s233
      %s250 = sphi 0, %s234
    $region4: #{tpu_custom_call.1} parent=1 // loop_header_branch
      %24 = sbr.rel (%p22) target = $region8
    $region5: #{tpu_custom_call.1} parent=1 // loop_body
      %s26 = ssub.s32 %s21, 1
      %s27 = ssub.s32 %s21, 2
      %s28 = sadd.s32 %s21, 1
      %s29 = ssub.s32 %s21, %s28
      %p30 = scmp.eq.s32.totalorder %s29, 0
      %s32 = sadd.s32 %s31, 1
      %s33 = scalar_select %p30, %s31, %s32
      %p36 = pneg %p30
      %p37 = scmp.eq.s32.totalorder %s21, 1
      %p38 = por %p36, %p37
      %p39 = scmp.ne.s32.totalorder %s31, %s34
      %p40 = scmp.eq.s32.totalorder %s21, 0
      %p41 = por %p39, %p40
      %p42 = scmp.ne.s32.totalorder %s31, %s34
      %p43 = scmp.eq.s32.totalorder %s26, 1
      %p44 = por %p42, %p43
      %p45 = scmp.ne.s32.totalorder %s34, %s35
      %p46 = scmp.eq.s32.totalorder %s26, 0
      %p47 = por %p45, %p46
      %p48 = scmp.ne.s32.totalorder %s34, %s35
      %p49 = scmp.eq.s32.totalorder %s27, 1
      %p50 = por %p48, %p49
      %p52 = scmp.ne.s32.totalorder %s35, %s51
      %p53 = scmp.eq.s32.totalorder %s27, 0
      %p54 = por %p52, %p53
      %s56 = sadd.s32 %s55, 1
      %p59 = scmp.eq.s32.totalorder %s21, 1
      %p60 = scmp.ne.s32.totalorder %s55, %s57
      %p61 = scmp.eq.s32.totalorder %s21, 0
      %p62 = por %p60, %p61
      %p63 = scmp.ne.s32.totalorder %s55, %s57
      %p64 = scmp.eq.s32.totalorder %s26, 1
      %p65 = por %p63, %p64
      %p66 = scmp.ne.s32.totalorder %s57, %s58
      %p67 = scmp.eq.s32.totalorder %s26, 0
      %p68 = por %p66, %p67
      %p69 = scmp.ne.s32.totalorder %s57, %s58
      %p70 = scmp.eq.s32.totalorder %s27, 1
      %p71 = por %p69, %p70
      %p73 = scmp.ne.s32.totalorder %s58, %s72
      %p74 = scmp.eq.s32.totalorder %s27, 0
      %p75 = por %p73, %p74
      %s77 = sadd.s32 %s76, 1
      %p80 = scmp.eq.s32.totalorder %s21, 1
      %p81 = scmp.ne.s32.totalorder %s76, %s78
      %p82 = scmp.eq.s32.totalorder %s21, 0
      %p83 = por %p81, %p82
      %p84 = scmp.ne.s32.totalorder %s76, %s78
      %p85 = scmp.eq.s32.totalorder %s26, 1
      %p86 = por %p84, %p85
      %p87 = scmp.ne.s32.totalorder %s78, %s79
      %p88 = scmp.eq.s32.totalorder %s26, 0
      %p89 = por %p87, %p88
      %p90 = scmp.ne.s32.totalorder %s78, %s79
      %p91 = scmp.eq.s32.totalorder %s27, 1
      %p92 = por %p90, %p91
      %p94 = scmp.ne.s32.totalorder %s79, %s93
      %p95 = scmp.eq.s32.totalorder %s27, 0
      %p96 = por %p94, %p95
      %s98 = sadd.s32 %s97, 1
      %p101 = scmp.eq.s32.totalorder %s21, 1
      %p102 = scmp.ne.s32.totalorder %s97, %s99
      %p103 = scmp.eq.s32.totalorder %s21, 0
      %p104 = por %p102, %p103
      %p105 = scmp.ne.s32.totalorder %s97, %s99
      %p106 = scmp.eq.s32.totalorder %s26, 1
      %p107 = por %p105, %p106
      %p108 = scmp.ne.s32.totalorder %s99, %s100
      %p109 = scmp.eq.s32.totalorder %s26, 0
      %p110 = por %p108, %p109
      %p111 = scmp.ne.s32.totalorder %s99, %s100
      %p112 = scmp.eq.s32.totalorder %s27, 1
      %p113 = por %p111, %p112
      %p115 = scmp.ne.s32.totalorder %s100, %s114
      %p116 = scmp.eq.s32.totalorder %s27, 0
      %p117 = por %p115, %p116
      %s119 = sadd.s32 %s118, 1
      %p122 = scmp.eq.s32.totalorder %s21, 1
      %p123 = scmp.ne.s32.totalorder %s118, %s120
      %p124 = scmp.eq.s32.totalorder %s21, 0
      %p125 = por %p123, %p124
      %p126 = scmp.ne.s32.totalorder %s118, %s120
      %p127 = scmp.eq.s32.totalorder %s26, 1
      %p128 = por %p126, %p127
      %p129 = scmp.ne.s32.totalorder %s120, %s121
      %p130 = scmp.eq.s32.totalorder %s26, 0
      %p131 = por %p129, %p130
      %p132 = scmp.ne.s32.totalorder %s120, %s121
      %p133 = scmp.eq.s32.totalorder %s27, 1
      %p134 = por %p132, %p133
      %p136 = scmp.ne.s32.totalorder %s121, %s135
      %p137 = scmp.eq.s32.totalorder %s27, 0
      %p138 = por %p136, %p137
      %s140 = sadd.s32 %s139, 1
      %p143 = scmp.eq.s32.totalorder %s21, 1
      %p144 = scmp.ne.s32.totalorder %s139, %s141
      %p145 = scmp.eq.s32.totalorder %s21, 0
      %p146 = por %p144, %p145
      %p147 = scmp.ne.s32.totalorder %s139, %s141
      %p148 = scmp.eq.s32.totalorder %s26, 1
      %p149 = por %p147, %p148
      %p150 = scmp.ne.s32.totalorder %s141, %s142
      %p151 = scmp.eq.s32.totalorder %s26, 0
      %p152 = por %p150, %p151
      %p153 = scmp.ne.s32.totalorder %s141, %s142
      %p154 = scmp.eq.s32.totalorder %s27, 1
      %p155 = por %p153, %p154
      %p157 = scmp.ne.s32.totalorder %s142, %s156
      %p158 = scmp.eq.s32.totalorder %s27, 0
      %p159 = por %p157, %p158
      %s161 = sadd.s32 %s160, 1
      %p164 = scmp.eq.s32.totalorder %s21, 1
      %p165 = scmp.ne.s32.totalorder %s160, %s162
      %p166 = scmp.eq.s32.totalorder %s21, 0
      %p167 = por %p165, %p166
      %p168 = scmp.ne.s32.totalorder %s160, %s162
      %p169 = scmp.eq.s32.totalorder %s26, 1
      %p170 = por %p168, %p169
      %p171 = scmp.ne.s32.totalorder %s162, %s163
      %p172 = scmp.eq.s32.totalorder %s26, 0
      %p173 = por %p171, %p172
      %p174 = scmp.ne.s32.totalorder %s162, %s163
      %p175 = scmp.eq.s32.totalorder %s27, 1
      %p176 = por %p174, %p175
      %p178 = scmp.ne.s32.totalorder %s163, %s177
      %p179 = scmp.eq.s32.totalorder %s27, 0
      %p180 = por %p178, %p179
      %s182 = sadd.s32 %s181, 1
      %p185 = scmp.eq.s32.totalorder %s21, 1
      %p186 = scmp.ne.s32.totalorder %s181, %s183
      %p187 = scmp.eq.s32.totalorder %s21, 0
      %p188 = por %p186, %p187
      %p189 = scmp.ne.s32.totalorder %s181, %s183
      %p190 = scmp.eq.s32.totalorder %s26, 1
      %p191 = por %p189, %p190
      %p192 = scmp.ne.s32.totalorder %s183, %s184
      %p193 = scmp.eq.s32.totalorder %s26, 0
      %p194 = por %p192, %p193
      %p195 = scmp.ne.s32.totalorder %s183, %s184
      %p196 = scmp.eq.s32.totalorder %s27, 1
      %p197 = por %p195, %p196
      %p199 = scmp.ne.s32.totalorder %s184, %s198
      %p200 = scmp.eq.s32.totalorder %s27, 0
      %p201 = por %p199, %p200
      %s202 = ssub.s32 %s21, %s28
      %p203 = scmp.eq.s32.totalorder %s202, 0
      %s205 = sadd.s32 %s204, 1
      %s206 = scalar_select %p203, %s204, %s205
      %p209 = pneg %p203
      %p210 = scmp.eq.s32.totalorder %s21, 1
      %p211 = por %p209, %p210
      %p212 = scmp.ne.s32.totalorder %s204, %s207
      %p213 = scmp.eq.s32.totalorder %s21, 0
      %p214 = por %p212, %p213
      %p215 = scmp.ne.s32.totalorder %s204, %s207
      %p216 = scmp.eq.s32.totalorder %s26, 1
      %p217 = por %p215, %p216
      %p218 = scmp.ne.s32.totalorder %s207, %s208
      %p219 = scmp.eq.s32.totalorder %s26, 0
      %p220 = por %p218, %p219
      %p221 = scmp.ne.s32.totalorder %s207, %s208
      %p222 = scmp.eq.s32.totalorder %s27, 1
      %p223 = por %p221, %p222
      %p225 = scmp.ne.s32.totalorder %s208, %s224
      %p226 = scmp.eq.s32.totalorder %s27, 0
      %p227 = por %p225, %p226
      %s228 = ssub.s32 %s21, %s28
      %p229 = scmp.eq.s32.totalorder %s228, 0
      %s231 = sadd.s32 %s230, 1
      %s232 = scalar_select %p229, %s230, %s231
      %p235 = pneg %p229
      %p236 = scmp.eq.s32.totalorder %s21, 1
      %p237 = por %p235, %p236
      %p238 = scmp.ne.s32.totalorder %s230, %s233
      %p239 = scmp.eq.s32.totalorder %s21, 0
      %p240 = por %p238, %p239
      %p241 = scmp.ne.s32.totalorder %s230, %s233
      %p242 = scmp.eq.s32.totalorder %s26, 1
      %p243 = por %p241, %p242
      %p244 = scmp.ne.s32.totalorder %s233, %s234
      %p245 = scmp.eq.s32.totalorder %s26, 0
      %p246 = por %p244, %p245
      %p247 = scmp.ne.s32.totalorder %s233, %s234
      %p248 = scmp.eq.s32.totalorder %s27, 1
      %p249 = por %p247, %p248
      %p251 = scmp.ne.s32.totalorder %s234, %s250
      %p252 = scmp.eq.s32.totalorder %s27, 0
      %p253 = por %p251, %p252
      %p254 = scmp.le.s32.totalorder 1, %s21
      %p255 = scmp.lt.s32.totalorder %s21, 3
      %p256 = pnand %p254, %p255
      %p257 = pneg %p256
      // Predicated region
      $region9: #{tpu_custom_call.1} parent=5 // pred_check
        _
      $region10: #{tpu_custom_call.1} parent=5 // pred_check_branch
        %259 = sbr.rel (%p256) target = $region12
      $region11: #{tpu_custom_call.1} parent=5 // pred_region
        %s260 = ssub.s32 %s21, 1
        // Predicated region
        $region13: #{tpu_custom_call.1} parent=11 // pred_check
          %p261 = pneg %p68
        $region14: #{tpu_custom_call.1} parent=11 // pred_check_branch
          %263 = sbr.rel (%p261) target = $region16
        $region15: #{tpu_custom_call.1} parent=11 // pred_region
          _
        $region16: #{tpu_custom_call.1} parent=11 // pred_fallthru
          _
        // Predicated region
        $region17: #{tpu_custom_call.1} parent=11 // pred_check
          %p264 = pneg %p89
        $region18: #{tpu_custom_call.1} parent=11 // pred_check_branch
          %266 = sbr.rel (%p264) target = $region20
        $region19: #{tpu_custom_call.1} parent=11 // pred_region
          %268 = vsyncadd [#allocation6], 0
          %s270 = sshll.u32 %s2, 4
          %s271 = int_to_ptr.hbm [resolvable:$true] %s270
          %s272 = sshll.u32 [#allocation5], 4
          %s273 = int_to_ptr.vmem [resolvable:$true] %s272
          %275 = dma.hbm_to_vmem [thread:$0]  %s271, 32, %s273, [#allocation6]
        $region20: #{tpu_custom_call.1} parent=11 // pred_fallthru
          _
        // Predicated region
        $region21: #{tpu_custom_call.1} parent=11 // pred_check
          %p276 = pneg %p110
        $region22: #{tpu_custom_call.1} parent=11 // pred_check_branch
          %278 = sbr.rel (%p276) target = $region24
        $region23: #{tpu_custom_call.1} parent=11 // pred_region
          _
        $region24: #{tpu_custom_call.1} parent=11 // pred_fallthru
          _
        // Predicated region
        $region25: #{tpu_custom_call.1} parent=11 // pred_check
          %p279 = pneg %p131
        $region26: #{tpu_custom_call.1} parent=11 // pred_check_branch
          %281 = sbr.rel (%p279) target = $region28
        $region27: #{tpu_custom_call.1} parent=11 // pred_region
          _
        $region28: #{tpu_custom_call.1} parent=11 // pred_fallthru
          _
        // Predicated region
        $region29: #{tpu_custom_call.1} parent=11 // pred_check
          %p282 = pneg %p152
        $region30: #{tpu_custom_call.1} parent=11 // pred_check_branch
          %284 = sbr.rel (%p282) target = $region32
        $region31: #{tpu_custom_call.1} parent=11 // pred_region
          _
        $region32: #{tpu_custom_call.1} parent=11 // pred_fallthru
          _
        // Predicated region
        $region33: #{tpu_custom_call.1} parent=11 // pred_check
          %p285 = pneg %p173
        $region34: #{tpu_custom_call.1} parent=11 // pred_check_branch
          %287 = sbr.rel (%p285) target = $region36
        $region35: #{tpu_custom_call.1} parent=11 // pred_region
          _
        $region36: #{tpu_custom_call.1} parent=11 // pred_fallthru
          _
        // Predicated region
        $region37: #{tpu_custom_call.1} parent=11 // pred_check
          %p288 = pneg %p194
        $region38: #{tpu_custom_call.1} parent=11 // pred_check_branch
          %290 = sbr.rel (%p288) target = $region40
        $region39: #{tpu_custom_call.1} parent=11 // pred_region
          _
        $region40: #{tpu_custom_call.1} parent=11 // pred_fallthru
          _
      $region12: #{tpu_custom_call.1} parent=5 // pred_fallthru
        _
      %p291 = scmp.lt.s32.totalorder %s21, 2
      // Predicated region
      $region41: #{tpu_custom_call.1} parent=5 // pred_check
        %p292 = pneg %p291
      $region42: #{tpu_custom_call.1} parent=5 // pred_check_branch
        %294 = sbr.rel (%p292) target = $region44
      $region43: #{tpu_custom_call.1} parent=5 // pred_region
        // Predicated region
        $region45: #{tpu_custom_call.1} parent=43 // pred_check
          %p295 = pneg %p41
        $region46: #{tpu_custom_call.1} parent=43 // pred_check_branch
          %297 = sbr.rel (%p295) target = $region48
        $region47: #{tpu_custom_call.1} parent=43 // pred_region
          %s298 = sand.u32 %s31, 1
          %s299 = scalar_lea.sflag [#allocation4], %s298
          %s300 = sand.u32 %s31, 1
          %s301 = smul.addr %s300, 16
          %s302 = scalar_lea.vmem [#allocation3], %s301
          %304 = vsyncadd %s299, 0
          %s305 = smul.addr %s21, 2
          %s306 = smul.addr %s305, 8
          %s307 = scalar_lea.hbm %s0, %s306
          %s309 = sshll.u32 %s307, 4
          %s310 = int_to_ptr.hbm [resolvable:$true] %s309
          %s311 = sshll.u32 %s302, 4
          %s312 = int_to_ptr.vmem [resolvable:$true] %s311
          %314 = dma.hbm_to_vmem [thread:$0]  %s310, 256, %s312, %s299
        $region48: #{tpu_custom_call.1} parent=43 // pred_fallthru
          _
      $region44: #{tpu_custom_call.1} parent=5 // pred_fallthru
        _
      %p315 = scmp.le.s32.totalorder 1, %s21
      %p316 = scmp.lt.s32.totalorder %s21, 3
      %p317 = pnand %p315, %p316
      %p318 = pneg %p317
      // Predicated region
      $region49: #{tpu_custom_call.1} parent=5 // pred_check
        _
      $region50: #{tpu_custom_call.1} parent=5 // pred_check_branch
        %320 = sbr.rel (%p317) target = $region52
      $region51: #{tpu_custom_call.1} parent=5 // pred_region
        %s321 = ssub.s32 %s21, 1
        %s322 = sand.u32 %s34, 1
        %s323 = scalar_lea.sflag [#allocation4], %s322
        %s324 = sand.u32 %s34, 1
        %s325 = smul.addr %s324, 16
        %s326 = scalar_lea.vmem [#allocation3], %s325
        // Predicated region
        $region53: #{tpu_custom_call.1} parent=51 // pred_check
          %p327 = pneg %p47
        $region54: #{tpu_custom_call.1} parent=51 // pred_check_branch
          %329 = sbr.rel (%p327) target = $region56
        $region55: #{tpu_custom_call.1} parent=51 // pred_region
          %331 = dma.done %s323, 256
        $region56: #{tpu_custom_call.1} parent=51 // pred_fallthru
          _
        // Predicated region
        $region57: #{tpu_custom_call.1} parent=51 // pred_check
          %p332 = pneg %p89
        $region58: #{tpu_custom_call.1} parent=51 // pred_check_branch
          %334 = sbr.rel (%p332) target = $region60
        $region59: #{tpu_custom_call.1} parent=51 // pred_region
          %336 = dma.done [#allocation6], 32
        $region60: #{tpu_custom_call.1} parent=51 // pred_fallthru
          _
        %s337 = sand.u32 %s34, 1
        %s338 = scalar_lea.sflag [#allocation4], %s337
        %s339 = sand.u32 %s34, 1
        %s340 = smul.addr %s339, 16
        %s341 = scalar_lea.vmem [#allocation3], %s340
        %p342 = pneg %p47
        %p343 = pneg %p44
        %p344 = pneg %p68
        %p345 = pneg %p65
        %p346 = pneg %p89
        %p347 = pneg %p86
        %p348 = pneg %p110
        %p349 = pneg %p107
        %p350 = pneg %p131
        %p351 = pneg %p128
        %p352 = pneg %p152
        %p353 = pneg %p149
        %p354 = pneg %p173
        %p355 = pneg %p170
        %p356 = pneg %p194
        %p357 = pneg %p191
        %p358 = pneg %p220
        %p359 = pneg %p217
        %p360 = scmp.lt.s32.totalorder %s26, 1
        %s361 = scalar_select %p360, %s26, 1
        %s362 = smul.addr %s361, 8
        %s363 = scalar_lea.vmem %s8, %s362
        %p364 = pneg %p246
        %p365 = pneg %p243
        %p366 = scmp.lt.s32.totalorder %s26, 1
        %s367 = scalar_select %p366, %s26, 1
        %s368 = smul.addr %s367, 8
        %s369 = scalar_lea.vmem %s9, %s368
        %p370 = scmp.lt.s32.totalorder %s26, 1
        %s371 = scalar_select %p370, %s26, 1
        %s372 = smul.addr %s371, 8
        %s373 = scalar_lea.vmem %s8, %s372
        %p374 = scmp.lt.s32.totalorder %s26, 1
        %s375 = scalar_select %p374, %s26, 1
        %s376 = smul.addr %s375, 8
        %s377 = scalar_lea.vmem %s9, %s376
        %v378 = vld [vmem:[%s326] sm:$0xff]
        %v379 = vld [vmem:[%s326 + $0x8] sm:$0xff]
        %v380 = vld [vmem:[%s1] sm:$0xff]
        %v381 = vld [vmem:[%s1 + $0x8] sm:$0xff]
        %v382 = vld [vmem:[%s1 + $0x10] sm:$0xff]
        %v383 = vld [vmem:[%s1 + $0x18] sm:$0xff]
        %v384 = vld [vmem:[%s1 + $0x20] sm:$0xff]
        %v385 = vld [vmem:[%s1 + $0x28] sm:$0xff]
        %v386 = vld [vmem:[%s1 + $0x30] sm:$0xff]
        %v387 = vld [vmem:[%s1 + $0x38] sm:$0xff]
        %v388 = vld [vmem:[%s1 + $0x40] sm:$0xff]
        %v389 = vld [vmem:[%s1 + $0x48] sm:$0xff]
        %v390 = vld [vmem:[%s1 + $0x50] sm:$0xff]
        %v391 = vld [vmem:[%s1 + $0x58] sm:$0xff]
        %v392 = vld [vmem:[%s1 + $0x60] sm:$0xff]
        %v393 = vld [vmem:[%s1 + $0x68] sm:$0xff]
        %v394 = vld [vmem:[%s1 + $0x70] sm:$0xff]
        %v395 = vld [vmem:[%s1 + $0x78] sm:$0xff]
        %v396 = vld [vmem:[%s1 + $0x80] sm:$0xff]
        %v397 = vld [vmem:[%s1 + $0x88] sm:$0xff]
        %v398 = vld [vmem:[%s1 + $0x90] sm:$0xff]
        %v399 = vld [vmem:[%s1 + $0x98] sm:$0xff]
        %v400 = vld [vmem:[%s1 + $0xa0] sm:$0xff]
        %v401 = vld [vmem:[%s1 + $0xa8] sm:$0xff]
        %v402 = vld [vmem:[%s1 + $0xb0] sm:$0xff]
        %v403 = vld [vmem:[%s1 + $0xb8] sm:$0xff]
        %v404 = vld [vmem:[%s1 + $0xc0] sm:$0xff]
        %v405 = vld [vmem:[%s1 + $0xc8] sm:$0xff]
        %v406 = vld [vmem:[%s1 + $0xd0] sm:$0xff]
        %v407 = vld [vmem:[%s1 + $0xd8] sm:$0xff]
        %v408 = vld [vmem:[%s1 + $0xe0] sm:$0xff]
        %v409 = vld [vmem:[%s1 + $0xe8] sm:$0xff]
        %v410 = vld [vmem:[%s1 + $0xf0] sm:$0xff]
        %v411 = vld [vmem:[%s1 + $0xf8] sm:$0xff]
        %v412 = vld [vmem:[%s1 + $0x100] sm:$0xff]
        %v413 = vld [vmem:[%s1 + $0x108] sm:$0xff]
        %v414 = vld [vmem:[%s1 + $0x110] sm:$0xff]
        %v415 = vld [vmem:[%s1 + $0x118] sm:$0xff]
        %v416 = vld [vmem:[%s1 + $0x120] sm:$0xff]
        %v417 = vld [vmem:[%s1 + $0x128] sm:$0xff]
        %v418 = vld [vmem:[%s1 + $0x130] sm:$0xff]
        %v419 = vld [vmem:[%s1 + $0x138] sm:$0xff]
        %v420 = vld [vmem:[%s1 + $0x140] sm:$0xff]
        %v421 = vld [vmem:[%s1 + $0x148] sm:$0xff]
        %v422 = vld [vmem:[%s1 + $0x150] sm:$0xff]
        %v423 = vld [vmem:[%s1 + $0x158] sm:$0xff]
        %v424 = vld [vmem:[%s1 + $0x160] sm:$0xff]
        %v425 = vld [vmem:[%s1 + $0x168] sm:$0xff]
        %v426 = vld [vmem:[%s1 + $0x170] sm:$0xff]
        %v427 = vld [vmem:[%s1 + $0x178] sm:$0xff]
        %v428 = vld [vmem:[%s1 + $0x180] sm:$0xff]
        %v429 = vld [vmem:[%s1 + $0x188] sm:$0xff]
        %v430 = vld [vmem:[%s1 + $0x190] sm:$0xff]
        %v431 = vld [vmem:[%s1 + $0x198] sm:$0xff]
        %v432 = vld [vmem:[%s1 + $0x1a0] sm:$0xff]
        %v433 = vld [vmem:[%s1 + $0x1a8] sm:$0xff]
        %v434 = vld [vmem:[%s1 + $0x1b0] sm:$0xff]
        %v435 = vld [vmem:[%s1 + $0x1b8] sm:$0xff]
        %v436 = vld [vmem:[%s1 + $0x1c0] sm:$0xff]
        %v437 = vld [vmem:[%s1 + $0x1c8] sm:$0xff]
        %v438 = vld [vmem:[%s1 + $0x1d0] sm:$0xff]
        %v439 = vld [vmem:[%s1 + $0x1d8] sm:$0xff]
        %v440 = vld [vmem:[%s1 + $0x1e0] sm:$0xff]
        %v441 = vld [vmem:[%s1 + $0x1e8] sm:$0xff]
        %v442 = vld [vmem:[%s1 + $0x1f0] sm:$0xff]
        %v443 = vld [vmem:[%s1 + $0x1f8] sm:$0xff]
        %v444 = vld [vmem:[#allocation5] sm:$0x3]
        %v446 = vperm.slane %v444, 0
        %v447 = vperm.slane %v444, 1
        %450 = vmatpush.msra.mxu0 %v410
        %451 = vmatpush.msra.mxu0 %v408
        %452 = vmatpush.msra.mxu0 %v406
        %453 = vmatpush.msra.mxu0 %v404
        %454 = vmatpush.msra.mxu0 %v402
        %455 = vmatpush.msra.mxu0 %v400
        %456 = vmatpush.msra.mxu0 %v398
        %457 = vmatpush.msra.mxu0 %v396
        %458 = vmatpush.msra.mxu0 %v394
        %459 = vmatpush.msra.mxu0 %v392
        %460 = vmatpush.msra.mxu0 %v390
        %461 = vmatpush.msra.mxu0 %v388
        %462 = vmatpush.msra.mxu0 %v386
        %463 = vmatpush.msra.mxu0 %v384
        %464 = vmatpush.msra.mxu0 %v382
        %465 = vmatpush.msra.mxu0 %v380
        %466 = vmatmul.f32.gmra.mxu0 %v378
        %v467 = vpop.f32.mrf.mxu0
        %v468 = vadd.f32 %v446, %v467
        %469 = vdwg.mxu0
        %470 = vmatpush.msra.mxu0 %v442
        %471 = vmatpush.msra.mxu0 %v440
        %472 = vmatpush.msra.mxu0 %v438
        %473 = vmatpush.msra.mxu0 %v436
        %474 = vmatpush.msra.mxu0 %v434
        %475 = vmatpush.msra.mxu0 %v432
        %476 = vmatpush.msra.mxu0 %v430
        %477 = vmatpush.msra.mxu0 %v428
        %478 = vmatpush.msra.mxu0 %v426
        %479 = vmatpush.msra.mxu0 %v424
        %480 = vmatpush.msra.mxu0 %v422
        %481 = vmatpush.msra.mxu0 %v420
        %482 = vmatpush.msra.mxu0 %v418
        %483 = vmatpush.msra.mxu0 %v416
        %484 = vmatpush.msra.mxu0 %v414
        %485 = vmatpush.msra.mxu0 %v412
        %486 = vmatmul.f32.gmra.mxu0 %v379
        %v487 = vpop.f32.mrf.mxu0
        %v488 = vadd.f32 %v468, %v487
        %489 = vdwg.mxu0
        %490 = vmatpush.msra.mxu0 %v411
        %491 = vmatpush.msra.mxu0 %v409
        %492 = vmatpush.msra.mxu0 %v407
        %493 = vmatpush.msra.mxu0 %v405
        %494 = vmatpush.msra.mxu0 %v403
        %495 = vmatpush.msra.mxu0 %v401
        %496 = vmatpush.msra.mxu0 %v399
        %497 = vmatpush.msra.mxu0 %v397
        %498 = vmatpush.msra.mxu0 %v395
        %499 = vmatpush.msra.mxu0 %v393
        %500 = vmatpush.msra.mxu0 %v391
        %501 = vmatpush.msra.mxu0 %v389
        %502 = vmatpush.msra.mxu0 %v387
        %503 = vmatpush.msra.mxu0 %v385
        %504 = vmatpush.msra.mxu0 %v383
        %505 = vmatpush.msra.mxu0 %v381
        %506 = vmatmul.f32.gmra.mxu0 %v378
        %v507 = vpop.f32.mrf.mxu0
        %v508 = vadd.f32 %v447, %v507
        %509 = vdwg.mxu0
        %510 = vmatpush.msra.mxu0 %v443
        %511 = vmatpush.msra.mxu0 %v441
        %512 = vmatpush.msra.mxu0 %v439
        %513 = vmatpush.msra.mxu0 %v437
        %514 = vmatpush.msra.mxu0 %v435
        %515 = vmatpush.msra.mxu0 %v433
        %516 = vmatpush.msra.mxu0 %v431
        %517 = vmatpush.msra.mxu0 %v429
        %518 = vmatpush.msra.mxu0 %v427
        %519 = vmatpush.msra.mxu0 %v425
        %520 = vmatpush.msra.mxu0 %v423
        %521 = vmatpush.msra.mxu0 %v421
        %522 = vmatpush.msra.mxu0 %v419
        %523 = vmatpush.msra.mxu0 %v417
        %524 = vmatpush.msra.mxu0 %v415
        %525 = vmatpush.msra.mxu0 %v413
        %526 = vmatmul.f32.gmra.mxu0 %v379
        %v527 = vpop.f32.mrf.mxu0
        %v528 = vadd.f32 %v508, %v527
        %529 = vdwg.mxu0
        %v530 = vmax.f32 %v488, 0.0
        %v531 = vmax.f32 %v528, 0.0
        %v532 = vld [vmem:[%s3] sm:$0xff]
        %v533 = vld [vmem:[%s3 + $0x8] sm:$0xff]
        %v534 = vld [vmem:[%s3 + $0x10] sm:$0xff]
        %v535 = vld [vmem:[%s3 + $0x18] sm:$0xff]
        %v536 = vld [vmem:[%s3 + $0x20] sm:$0xff]
        %v537 = vld [vmem:[%s3 + $0x28] sm:$0xff]
        %v538 = vld [vmem:[%s3 + $0x30] sm:$0xff]
        %v539 = vld [vmem:[%s3 + $0x38] sm:$0xff]
        %v540 = vld [vmem:[%s3 + $0x40] sm:$0xff]
        %v541 = vld [vmem:[%s3 + $0x48] sm:$0xff]
        %v542 = vld [vmem:[%s3 + $0x50] sm:$0xff]
        %v543 = vld [vmem:[%s3 + $0x58] sm:$0xff]
        %v544 = vld [vmem:[%s3 + $0x60] sm:$0xff]
        %v545 = vld [vmem:[%s3 + $0x68] sm:$0xff]
        %v546 = vld [vmem:[%s3 + $0x70] sm:$0xff]
        %v547 = vld [vmem:[%s3 + $0x78] sm:$0xff]
        %v548 = vld [vmem:[%s3 + $0x80] sm:$0xff]
        %v549 = vld [vmem:[%s3 + $0x88] sm:$0xff]
        %v550 = vld [vmem:[%s3 + $0x90] sm:$0xff]
        %v551 = vld [vmem:[%s3 + $0x98] sm:$0xff]
        %v552 = vld [vmem:[%s3 + $0xa0] sm:$0xff]
        %v553 = vld [vmem:[%s3 + $0xa8] sm:$0xff]
        %v554 = vld [vmem:[%s3 + $0xb0] sm:$0xff]
        %v555 = vld [vmem:[%s3 + $0xb8] sm:$0xff]
        %v556 = vld [vmem:[%s3 + $0xc0] sm:$0xff]
        %v557 = vld [vmem:[%s3 + $0xc8] sm:$0xff]
        %v558 = vld [vmem:[%s3 + $0xd0] sm:$0xff]
        %v559 = vld [vmem:[%s3 + $0xd8] sm:$0xff]
        %v560 = vld [vmem:[%s3 + $0xe0] sm:$0xff]
        %v561 = vld [vmem:[%s3 + $0xe8] sm:$0xff]
        %v562 = vld [vmem:[%s3 + $0xf0] sm:$0xff]
        %v563 = vld [vmem:[%s3 + $0xf8] sm:$0xff]
        %s564 = sld [smem:[#allocation2]]
        %v565 = vstv %s564
        %566 = vmatpush.msra.mxu0 %v547
        %567 = vmatpush.msra.mxu0 %v546
        %568 = vmatpush.msra.mxu0 %v545
        %569 = vmatpush.msra.mxu0 %v544
        %570 = vmatpush.msra.mxu0 %v543
        %571 = vmatpush.msra.mxu0 %v542
        %572 = vmatpush.msra.mxu0 %v541
        %573 = vmatpush.msra.mxu0 %v540
        %574 = vmatpush.msra.mxu0 %v539
        %575 = vmatpush.msra.mxu0 %v538
        %576 = vmatpush.msra.mxu0 %v537
        %577 = vmatpush.msra.mxu0 %v536
        %578 = vmatpush.msra.mxu0 %v535
        %579 = vmatpush.msra.mxu0 %v534
        %580 = vmatpush.msra.mxu0 %v533
        %581 = vmatpush.msra.mxu0 %v532
        %582 = vmatmul.f32.gmra.mxu0 %v530
        %v583 = vpop.f32.mrf.mxu0
        %v584 = vadd.f32 %v565, %v583
        %585 = vdwg.mxu0
        %586 = vmatpush.msra.mxu0 %v563
        %587 = vmatpush.msra.mxu0 %v562
        %588 = vmatpush.msra.mxu0 %v561
        %589 = vmatpush.msra.mxu0 %v560
        %590 = vmatpush.msra.mxu0 %v559
        %591 = vmatpush.msra.mxu0 %v558
        %592 = vmatpush.msra.mxu0 %v557
        %593 = vmatpush.msra.mxu0 %v556
        %594 = vmatpush.msra.mxu0 %v555
        %595 = vmatpush.msra.mxu0 %v554
        %596 = vmatpush.msra.mxu0 %v553
        %597 = vmatpush.msra.mxu0 %v552
        %598 = vmatpush.msra.mxu0 %v551
        %599 = vmatpush.msra.mxu0 %v550
        %600 = vmatpush.msra.mxu0 %v549
        %601 = vmatpush.msra.mxu0 %v548
        %602 = vmatmul.f32.gmra.mxu0 %v531
        %v603 = vpop.f32.mrf.mxu0
        %v604 = vadd.f32 %v584, %v603
        %605 = vdwg.mxu0
        %vm606 = vcmask 64512
        %v607 = vsel %vm606, %v604, -inf
        %608 = vmax.xlane.f32.xlu0 %v607
        %v609 = vpop.xlane.xlu0 %608
        %v610 = vsub.f32 %v604, %v609
        %v611 = vmul.f32 %v610, 1.442695
        %v612 = vpow.pop %v611
        %v613 = vsel %vm606, %v612, 0.0
        %614 = vadd.xlane.f32.xlu0 %v613
        %v615 = vpop.xlane.xlu0 %614
        %v616 = vrcp.pop %v615
        %v617 = vmul.f32 %v615, %v616
        %v618 = vsub.f32 2.0, %v617
        %v619 = vmul.f32 %v616, %v618
        %v620 = vmul.f32 %v612, %v619
        %v621 = vld [vmem:[%s5] sm:$0xff]
        %v622 = vld [vmem:[%s5 + $0x8] sm:$0xff]
        %v624 = vsel %vm606, %v620, 0
        %626 = vmatpush.msra.mxu0 0.0
        %627 = vmatpush.msra.mxu0 0.0
        %628 = vmatpush.msra.mxu0 0.0
        %629 = vmatpush.msra.mxu0 0.0
        %630 = vmatpush.msra.mxu0 0.0
        %631 = vmatpush.msra.mxu0 0.0
        %632 = vmatpush.msra.mxu0 0.0
        %633 = vmatpush.msra.mxu0 0.0
        %634 = vmatpush.msra.mxu0 0.0
        %635 = vmatpush.msra.mxu0 0.0
        %636 = vmatpush.msra.mxu0 0.0
        %637 = vmatpush.msra.mxu0 0.0
        %638 = vmatpush.msra.mxu0 0.0
        %639 = vmatpush.msra.mxu0 0.0
        %640 = vmatpush.msra.mxu0 0.0
        %641 = vmatpush.msra.mxu0 %v621
        %642 = vmatmul.f32.gmra.mxu0 %v624
        %v643 = vpop.f32.mrf.mxu0
        %v644 = vadd.f32 0.0, %v643
        %645 = vdwg.mxu0
        %646 = vmatpush.msra.mxu0 0.0
        %647 = vmatpush.msra.mxu0 0.0
        %648 = vmatpush.msra.mxu0 0.0
        %649 = vmatpush.msra.mxu0 0.0
        %650 = vmatpush.msra.mxu0 0.0
        %651 = vmatpush.msra.mxu0 0.0
        %652 = vmatpush.msra.mxu0 0.0
        %653 = vmatpush.msra.mxu0 0.0
        %654 = vmatpush.msra.mxu0 0.0
        %655 = vmatpush.msra.mxu0 0.0
        %656 = vmatpush.msra.mxu0 0.0
        %657 = vmatpush.msra.mxu0 0.0
        %658 = vmatpush.msra.mxu0 0.0
        %659 = vmatpush.msra.mxu0 0.0
        %660 = vmatpush.msra.mxu0 0.0
        %661 = vmatpush.msra.mxu0 %v622
        %662 = vmatmul.f32.gmra.mxu0 %v624
        %v663 = vpop.f32.mrf.mxu0
        %v664 = vadd.f32 0.0, %v663
        %665 = vdwg.mxu0
        %v666 = vmul.f32 %v378, %v644
        %v667 = vmul.f32 %v379, %v664
        %v668 = vld [vmem:[%s6] sm:$0xff]
        %v669 = vld [vmem:[%s6 + $0x8] sm:$0xff]
        %v670 = vld [vmem:[%s6 + $0x10] sm:$0xff]
        %v671 = vld [vmem:[%s6 + $0x18] sm:$0xff]
        %v672 = vld [vmem:[%s6 + $0x20] sm:$0xff]
        %v673 = vld [vmem:[%s6 + $0x28] sm:$0xff]
        %v674 = vld [vmem:[%s6 + $0x30] sm:$0xff]
        %v675 = vld [vmem:[%s6 + $0x38] sm:$0xff]
        %v676 = vld [vmem:[%s6 + $0x40] sm:$0xff]
        %v677 = vld [vmem:[%s6 + $0x48] sm:$0xff]
        %v678 = vld [vmem:[%s6 + $0x50] sm:$0xff]
        %v679 = vld [vmem:[%s6 + $0x58] sm:$0xff]
        %v680 = vld [vmem:[%s6 + $0x60] sm:$0xff]
        %v681 = vld [vmem:[%s6 + $0x68] sm:$0xff]
        %v682 = vld [vmem:[%s6 + $0x70] sm:$0xff]
        %v683 = vld [vmem:[%s6 + $0x78] sm:$0xff]
        %v684 = vld [vmem:[%s6 + $0x80] sm:$0xff]
        %v685 = vld [vmem:[%s6 + $0x88] sm:$0xff]
        %v686 = vld [vmem:[%s6 + $0x90] sm:$0xff]
        %v687 = vld [vmem:[%s6 + $0x98] sm:$0xff]
        %v688 = vld [vmem:[%s6 + $0xa0] sm:$0xff]
        %v689 = vld [vmem:[%s6 + $0xa8] sm:$0xff]
        %v690 = vld [vmem:[%s6 + $0xb0] sm:$0xff]
        %v691 = vld [vmem:[%s6 + $0xb8] sm:$0xff]
        %v692 = vld [vmem:[%s6 + $0xc0] sm:$0xff]
        %v693 = vld [vmem:[%s6 + $0xc8] sm:$0xff]
        %v694 = vld [vmem:[%s6 + $0xd0] sm:$0xff]
        %v695 = vld [vmem:[%s6 + $0xd8] sm:$0xff]
        %v696 = vld [vmem:[%s6 + $0xe0] sm:$0xff]
        %v697 = vld [vmem:[%s6 + $0xe8] sm:$0xff]
        %v698 = vld [vmem:[%s6 + $0xf0] sm:$0xff]
        %v699 = vld [vmem:[%s6 + $0xf8] sm:$0xff]
        %v700 = vld [vmem:[%s7] sm:$0x1]
        %v702 = vperm.slane %v700, 0
        %704 = vmatpush.msra.mxu0 %v683
        %705 = vmatpush.msra.mxu0 %v682
        %706 = vmatpush.msra.mxu0 %v681
        %707 = vmatpush.msra.mxu0 %v680
        %708 = vmatpush.msra.mxu0 %v679
        %709 = vmatpush.msra.mxu0 %v678
        %710 = vmatpush.msra.mxu0 %v677
        %711 = vmatpush.msra.mxu0 %v676
        %712 = vmatpush.msra.mxu0 %v675
        %713 = vmatpush.msra.mxu0 %v674
        %714 = vmatpush.msra.mxu0 %v673
        %715 = vmatpush.msra.mxu0 %v672
        %716 = vmatpush.msra.mxu0 %v671
        %717 = vmatpush.msra.mxu0 %v670
        %718 = vmatpush.msra.mxu0 %v669
        %719 = vmatpush.msra.mxu0 %v668
        %720 = vmatmul.f32.gmra.mxu0 %v666
        %v721 = vpop.f32.mrf.mxu0
        %v722 = vadd.f32 %v702, %v721
        %723 = vdwg.mxu0
        %724 = vmatpush.msra.mxu0 %v699
        %725 = vmatpush.msra.mxu0 %v698
        %726 = vmatpush.msra.mxu0 %v697
        %727 = vmatpush.msra.mxu0 %v696
        %728 = vmatpush.msra.mxu0 %v695
        %729 = vmatpush.msra.mxu0 %v694
        %730 = vmatpush.msra.mxu0 %v693
        %731 = vmatpush.msra.mxu0 %v692
        %732 = vmatpush.msra.mxu0 %v691
        %733 = vmatpush.msra.mxu0 %v690
        %734 = vmatpush.msra.mxu0 %v689
        %735 = vmatpush.msra.mxu0 %v688
        %736 = vmatpush.msra.mxu0 %v687
        %737 = vmatpush.msra.mxu0 %v686
        %738 = vmatpush.msra.mxu0 %v685
        %739 = vmatpush.msra.mxu0 %v684
        %740 = vmatmul.f32.gmra.mxu0 %v667
        %v741 = vpop.f32.mrf.mxu0
        %v742 = vadd.f32 %v722, %v741
        %743 = vdwg.mxu0
        %vm744 = vcmask 31744
        %v745 = vsel %vm744, %v742, -inf
        %746 = vmax.xlane.f32.xlu0 %v745
        %v747 = vpop.xlane.xlu0 %746
        %v748 = vsub.f32 %v742, %v747
        %v749 = vmul.f32 %v748, 1.442695
        %v750 = vpow.pop %v749
        %v751 = vsel %vm744, %v750, 0.0
        %752 = vadd.xlane.f32.xlu0 %v751
        %v753 = vpop.xlane.xlu0 %752
        %v754 = vlog2.pop %v753
        %v755 = vmul.f32 %v754, 0.6931472
        %v756 = vsub.f32 %v748, %v755
        %757 = vst.msk [vmem:[%s373] sm:$0xff] %vm744, %v756
        %758 = vst.msk [vmem:[%s377] sm:$0xff] %vm606, %v620
        %p759 = scmp.lt.s32.totalorder %s26, 1
        %s760 = scalar_select %p759, %s26, 1
        %s761 = smul.addr %s760, 8
        %s762 = scalar_lea.vmem %s8, %s761
        %p763 = scmp.lt.s32.totalorder %s26, 1
        %s764 = scalar_select %p763, %s26, 1
        %s765 = smul.addr %s764, 8
        %s766 = scalar_lea.vmem %s9, %s765
        // Predicated region
        $region61: #{tpu_custom_call.1} parent=51 // pred_check
          %p767 = pneg %p217
        $region62: #{tpu_custom_call.1} parent=51 // pred_check_branch
          %769 = sbr.rel (%p767) target = $region64
        $region63: #{tpu_custom_call.1} parent=51 // pred_region
          _
        $region64: #{tpu_custom_call.1} parent=51 // pred_fallthru
          _
        // Predicated region
        $region65: #{tpu_custom_call.1} parent=51 // pred_check
          %p770 = pneg %p243
        $region66: #{tpu_custom_call.1} parent=51 // pred_check_branch
          %772 = sbr.rel (%p770) target = $region68
        $region67: #{tpu_custom_call.1} parent=51 // pred_region
          _
        $region68: #{tpu_custom_call.1} parent=51 // pred_fallthru
          _
      $region52: #{tpu_custom_call.1} parent=5 // pred_fallthru
        _
      %p773 = scmp.le.s32.totalorder 2, %s21
      // Predicated region
      $region69: #{tpu_custom_call.1} parent=5 // pred_check
        %p774 = pneg %p773
      $region70: #{tpu_custom_call.1} parent=5 // pred_check_branch
        %776 = sbr.rel (%p774) target = $region72
      $region71: #{tpu_custom_call.1} parent=5 // pred_region
        %s777 = ssub.s32 %s21, 2
        // Predicated region
        $region73: #{tpu_custom_call.1} parent=71 // pred_check
          %p778 = pneg %p223
        $region74: #{tpu_custom_call.1} parent=71 // pred_check_branch
          %780 = sbr.rel (%p778) target = $region76
        $region75: #{tpu_custom_call.1} parent=71 // pred_region
          %p781 = scmp.lt.s32.totalorder %s27, 1
          %s782 = scalar_select %p781, %s27, 1
          %s783 = smul.addr %s782, 8
          %s784 = scalar_lea.vmem %s8, %s783
        $region76: #{tpu_custom_call.1} parent=71 // pred_fallthru
          _
        // Predicated region
        $region77: #{tpu_custom_call.1} parent=71 // pred_check
          %p785 = pneg %p249
        $region78: #{tpu_custom_call.1} parent=71 // pred_check_branch
          %787 = sbr.rel (%p785) target = $region80
        $region79: #{tpu_custom_call.1} parent=71 // pred_region
          %p788 = scmp.lt.s32.totalorder %s27, 1
          %s789 = scalar_select %p788, %s27, 1
          %s790 = smul.addr %s789, 8
          %s791 = scalar_lea.vmem %s9, %s790
        $region80: #{tpu_custom_call.1} parent=71 // pred_fallthru
          _
      $region72: #{tpu_custom_call.1} parent=5 // pred_fallthru
        _
    $region6: #{tpu_custom_call.1} parent=1 // loop_footer
      %s25 = sadd.s32 1, %s21
    $region7: #{tpu_custom_call.1} parent=1 // loop_footer_branch
      %20 = sbr.rel target = $region3
    $region8: #{tpu_custom_call.1} parent=1 // loop_exit
      _
    %792 = vsyncpa [#allocation4], 1
    %s793 = scalar_lea.sflag [#allocation4], 1
    %794 = vsyncpa %s793, 1
    %795 = vsyncpa [#allocation6], 1

</llo_original>
